<compile_context>
chip_gen: v7x
topology: tpu7x:2x2x1
jax: 0.10.0
libtpu: 0.0.40
codegen_flags: <defaults>
</compile_context>

<pallas_src>
import jax
import jax.numpy as jnp
from jax.experimental import pallas as pl
from jax.experimental.pallas import tpu as pltpu


def _cdiv(a, b):
    return -(-a // b)


def _penet_fill_kernel(xtab_ref, ytab_ref, out_ref):
    """Broadcast-fill one (4F, TH, TW) output tile from the separable tables.

    xtab_ref : VMEM (2F, 1, TW)  -- [cos; sin](coeffs * x_row), column pattern
    ytab_ref : VMEM (2F, TH, 1)  -- [cos; sin](coeffs * y_col), row constants
    out_ref  : VMEM (4F, TH, TW) -- channel-first output tile
    """
    c2 = out_ref.shape[0] // 2          # 2F
    th = out_ref.shape[1]
    tw = out_ref.shape[2]
    # Channels [0, 2F): same (2F, TW) lane pattern for every image row
    # (sublane broadcast -> full-block store).
    out_ref[0:c2, :, :] = jnp.broadcast_to(xtab_ref[...], (c2, th, tw))
    # Channels [2F, 4F): per-row constants replicated across lanes
    # (lane broadcast -> full-block store).
    out_ref[c2:2 * c2, :, :] = jnp.broadcast_to(ytab_ref[...], (c2, th, tw))


def _pick_tiles(H, W, num_freqs):
    """Pick (TH, TW) for the (4F, H, W) output.

    ~2 MiB f32 of output per grid step (double-buffered fits every
    generation, incl. v7x's 64 MiB VMEM), TH a multiple of 8 (or == H),
    TW a multiple of 128 (or == W), >= 2 row-steps when H allows it so both
    v7x TensorCores get work, and a near-even division of H to bound edge
    waste to < 8 rows.
    """
    budget = 2 * 1024 * 1024
    per_px = 4 * num_freqs * 4          # output bytes per pixel (all 4F chans)

    # Lane (W) tile: keep full image rows unless even an 8-row slab blows VMEM.
    if W <= 128 or 8 * W * per_px <= budget:
        tw = W
    else:
        tw = max(128, (budget // (8 * per_px)) // 128 * 128)

    # Sublane (H) tile.
    if H <= 8:
        th = H                           # block dim must equal H when H < 8
    else:
        th = max(8, (budget // (tw * per_px)) // 8 * 8)
        th = min(th, (H // 8) * 8)
        if H >= 16:                      # >= 2 grid steps -> v7x megacore
            th = min(th, max(8, ((H // 2) // 8) * 8))
        n_steps = _cdiv(H, th)           # near-even split of H
        th = min(th, ((_cdiv(H, n_steps) + 7) // 8) * 8)
    return th, tw


def penet_forward(x, params, img_size):
    """Pallas implementation of PENet.forward.  x: (F,) -> out: (1, 4F, H, W)."""
    w1, b1, w2, b2 = params              # w1:(F,Hid), b1:(1,Hid), w2:(Hid,F), b2:(1,F)
    F = x.shape[-1]
    H, W = img_size

    # ---- tiny MLP hoisted out of the kernel, full f32 precision -------------
    h = jnp.maximum(
        jnp.dot(x.astype(jnp.float32), w1,
                precision=jax.lax.Precision.HIGHEST) + b1[0], 0.0)
    coeffs = jnp.dot(h, w2, precision=jax.lax.Precision.HIGHEST) + b2[0]   # (F,)

    # ---- separable mesh tables: only 2F*(W+H) transcendentals total ---------
    # max(.,1) guards H==1 / W==1 (torch would divide by zero -> NaN/inf).
    xs = jnp.arange(W, dtype=jnp.float32) / float(max(W - 1, 1))
    ys = jnp.arange(H, dtype=jnp.float32) / float(max(H - 1, 1))
    vx = coeffs[:, None] * xs[None, :]                       # (F, W)
    vy = coeffs[:, None] * ys[None, :]                       # (F, H)
    # Shapes chosen so the kernel's expansion is a pure sublane / lane
    # broadcast (no relayout or transpose inside the kernel).
    x_tab = jnp.concatenate([jnp.cos(vx), jnp.sin(vx)], 0).reshape(2 * F, 1, W)
    y_tab = jnp.concatenate([jnp.cos(vy), jnp.sin(vy)], 0).reshape(2 * F, H, 1)

    TH, TW = _pick_tiles(H, W, F)
    grid = (pl.cdiv(H, TH), pl.cdiv(W, TW))

    out = pl.pallas_call(
        _penet_fill_kernel,
        out_shape=jax.ShapeDtypeStruct((4 * F, H, W), jnp.float32),
        grid=grid,
        in_specs=[
            pl.BlockSpec((2 * F, 1, TW), lambda i, j: (0, 0, j)),   # x table
            pl.BlockSpec((2 * F, TH, 1), lambda i, j: (0, i, 0)),   # y table
        ],
        out_specs=pl.BlockSpec((4 * F, TH, TW), lambda i, j: (0, i, j)),
        compiler_params=pltpu.CompilerParams(
            dimension_semantics=("parallel", "parallel"),
            vmem_limit_bytes=32 * 1024 * 1024,
        ),
    )(x_tab, y_tab)

    return out[None]                     # (1, 4F, H, W) NCHW


def penet_reference(x, params, img_size):
    """Pure-JAX reference mirroring the torch forward exactly."""
    w1, b1, w2, b2 = params
    F = x.shape[-1]
    H, W = img_size
    xs = jnp.arange(W, dtype=jnp.float32) / float(max(W - 1, 1))
    ys = jnp.arange(H, dtype=jnp.float32) / float(max(H - 1, 1))
    X = jnp.broadcast_to(xs[None, :], (H, W))
    Y = jnp.broadcast_to(ys[:, None], (H, W))
    mesh_hw2 = jnp.transpose(jnp.stack([X, Y], 0), (1, 2, 0))[None]  # (1,H,W,2)

    h = jnp.maximum(
        jnp.dot(x, w1, precision=jax.lax.Precision.HIGHEST) + b1[0], 0.0)
    coeffs = jnp.dot(h, w2, precision=jax.lax.Precision.HIGHEST) + b2[0]  # (F,)

    vp = coeffs * mesh_hw2[..., None]                         # (1, H, W, 2, F)
    vp_cat = jnp.concatenate([jnp.cos(vp), jnp.sin(vp)], -1)  # (1, H, W, 2, 2F)
    flat = vp_cat.reshape(1, H, W, 4 * F)                     # flatten(-2, -1)
    return jnp.transpose(flat, (0, 3, 1, 2))                  # permute(0, 3, 1, 2)


if __name__ == "__main__":
    num_frequencies = 8
    img_size = (16, 16)

    key = jax.random.PRNGKey(0)
    k1, k2, k3, k4, k5 = jax.random.split(key, 5)
    w1 = jax.random.normal(k1, (num_frequencies, 100), jnp.float32) * (
        1.0 / (num_frequencies ** 0.5))
    b1 = jax.random.normal(k2, (1, 100), jnp.float32) * 0.1
    w2 = jax.random.normal(k3, (100, num_frequencies), jnp.float32) * 0.1
    b2 = jax.random.normal(k4, (1, num_frequencies), jnp.float32) * 0.1
    x = jax.random.normal(k5, (num_frequencies,), jnp.float32)
    params = (w1, b1, w2, b2)

    out = jax.block_until_ready(penet_forward(x, params, img_size))
    ref = jax.block_until_ready(penet_reference(x, params, img_size))

    assert out.shape == (1, 4 * num_frequencies, *img_size), out.shape
    if not jnp.allclose(out, ref, rtol=1e-5, atol=1e-5):
        raise AssertionError(
            f"mismatch, max abs err = {jnp.max(jnp.abs(out - ref))}")
    print("KERNEL_OK")
</pallas_src>

<mosaic_0001>
module attributes {stable_mosaic.version = 11 : i64} {
  func.func @_penet_fill_kernel(%arg0: i32, %arg1: i32, %arg2: memref<16x1x16xf32, #tpu.memory_space<vmem>>, %arg3: memref<16x8x1xf32, #tpu.memory_space<vmem>>, %arg4: memref<32x8x16xf32, #tpu.memory_space<vmem>>) attributes {dimension_semantics = [#tpu.dimension_semantics<parallel>, #tpu.dimension_semantics<parallel>], iteration_bounds = array<i64: 2, 1>, scalar_prefetch = 0 : i64, scratch_operands = 0 : i64, tpu.core_type = #tpu.core_type<tc>, window_params = [{transform_indices = @transform_0, window_bounds = array<i64: 16, 1, 16>}, {transform_indices = @transform_1, window_bounds = array<i64: 16, 8, 1>}, {transform_indices = @transform_2, window_bounds = array<i64: 32, 8, 16>}]} {
    %c0 = arith.constant 0 : index
    %c0_0 = arith.constant 0 : index
    %c0_1 = arith.constant 0 : index
    %0 = vector.load %arg2[%c0, %c0_0, %c0_1] : memref<16x1x16xf32, #tpu.memory_space<vmem>>, vector<16x1x16xf32>
    %1 = vector.shape_cast %0 : vector<16x1x16xf32> to vector<16x1x16xf32>
    %2 = vector.broadcast %1 : vector<16x1x16xf32> to vector<16x8x16xf32>
    %c0_2 = arith.constant 0 : index
    %c0_3 = arith.constant 0 : index
    %c0_4 = arith.constant 0 : index
    %3 = vector.load %arg4[%c0_2, %c0_3, %c0_4] : memref<32x8x16xf32, #tpu.memory_space<vmem>>, vector<16x8x16xf32>
    tpu.vector_store %arg4[%c0_2, %c0_3, %c0_4], %2 {strides = array<i32>} : memref<32x8x16xf32, #tpu.memory_space<vmem>>, vector<16x8x16xf32>,
    %c0_5 = arith.constant 0 : index
    %c0_6 = arith.constant 0 : index
    %c0_7 = arith.constant 0 : index
    %4 = vector.load %arg3[%c0_5, %c0_6, %c0_7] : memref<16x8x1xf32, #tpu.memory_space<vmem>>, vector<16x8x1xf32>
    %5 = vector.shape_cast %4 : vector<16x8x1xf32> to vector<16x8x1xf32>
    %6 = vector.broadcast %5 : vector<16x8x1xf32> to vector<16x8x16xf32>
    %c16 = arith.constant 16 : index
    %c0_8 = arith.constant 0 : index
    %c0_9 = arith.constant 0 : index
    %7 = vector.load %arg4[%c16, %c0_8, %c0_9] : memref<32x8x16xf32, #tpu.memory_space<vmem>>, vector<16x8x16xf32>
    tpu.vector_store %arg4[%c16, %c0_8, %c0_9], %6 {strides = array<i32>} : memref<32x8x16xf32, #tpu.memory_space<vmem>>, vector<16x8x16xf32>,
    return
  }
  func.func @transform_0(%arg0: i32, %arg1: i32) -> (i32, i32, i32) {
    %c0_i32 = arith.constant 0 : i32
    %c0_i32_0 = arith.constant 0 : i32
    %c0_i32_1 = arith.constant 0 : i32
    return %c0_i32, %c0_i32_0, %arg1 : i32, i32, i32
  }
  func.func @transform_1(%arg0: i32, %arg1: i32) -> (i32, i32, i32) {
    %c0_i32 = arith.constant 0 : i32
    %c0_i32_0 = arith.constant 0 : i32
    %c0_i32_1 = arith.constant 0 : i32
    return %c0_i32, %arg0, %c0_i32_0 : i32, i32, i32
  }
  func.func @transform_2(%arg0: i32, %arg1: i32) -> (i32, i32, i32) {
    %c0_i32 = arith.constant 0 : i32
    %c0_i32_0 = arith.constant 0 : i32
    return %c0_i32, %arg0, %arg1 : i32, i32, i32
  }
}

</mosaic_0001>

<llo_original>
// kernel: tpu_custom_call.1
$region0: #{tpu_custom_call.1}
  #allocation0 [shape = 'u32[]', space=smem, size = 0x4, offset = 0x4, fixed_abs, tag = 'smem constant byte address 0x4 - core index']
  #allocation1 [shape = 'u32[144,128]{1,0:T(1,128)}', space=vmem, size = 0x12000, scoped, tag = 'internal scratch']
  %s0 = inlined_call_operand.vmem [shape: f32[16,1,16], index: 0, kind: input, shape index: {}]
  %s1 = inlined_call_operand.vmem [shape: f32[16,16,1], index: 1, kind: input, shape index: {}]
  %s2 = inlined_call_operand.vmem [shape: f32[32,16,16], index: 2, kind: output, shape index: {}]
  %s3 = sld [smem:[#allocation0]]
  $region113: #{tpu_custom_call.1} parent=0
    _
  %s5 = ssub.s32 1, %s3
  %s6 = scalar_select 0, %s5, %s3
  $region1: #{tpu_custom_call.1} parent=0
    #allocation2 [shape = 'u8[131072]{0}', space=vmem, size = 0x20000, scoped, tag = 'input window, operand 1']
    #allocation3 [shape = 'u8[262144]{0}', space=vmem, size = 0x40000, scoped, tag = 'output window, operand 0']
    loop: start=0, step=1, limit=4
    $region2: #{tpu_custom_call.1} parent=1 // loop_pre_header
      _
    $region3: #{tpu_custom_call.1} parent=1 // loop_header
      %s8 = sphi 0, %s12
      %p9 = scmp.ge.s32.totalorder %s8, 4
      %s15 = sphi 0, %s27
      %s16 = sphi 0, %s23
      %s17 = sphi 0, %s15
      %s18 = sphi 0, %s16
      %s19 = sphi 0, %s17
      %s20 = sphi 0, %s18
      %s30 = sphi 0, %s32
      %s33 = sphi 0, %s30
      %s34 = sphi 0, %s33
      %s50 = sphi 0, %s34
      %s56 = sphi 0, %s58
      %s59 = sphi 0, %s56
      %s60 = sphi 0, %s59
      %s76 = sphi 0, %s60
      %s84 = sphi 0, %s86
      %s87 = sphi 0, %s84
      %s88 = sphi 0, %s87
      %s104 = sphi 0, %s88
    $region4: #{tpu_custom_call.1} parent=1 // loop_header_branch
      %11 = sbr.rel (%p9) target = $region8
    $region5: #{tpu_custom_call.1} parent=1 // loop_body
      %s13 = ssub.s32 %s8, 1
      %s14 = ssub.s32 %s8, 2
      %s21 = sadd.s32 1, %s16
      %p22 = scmp.ge.s32.totalorder %s21, 1
      %s23 = scalar_select %p22, 0, %s21
      %s24 = sadd.s32 1, %s15
      %s25 = scalar_select %p22, %s24, %s15
      %p26 = scmp.ge.s32.totalorder %s25, 2
      %s27 = scalar_select %p26, 0, %s25
      %s28 = ssub.s32 %s16, %s23
      %p29 = scmp.eq.s32.totalorder %s28, 0
      %s31 = sadd.s32 %s30, 1
      %s32 = scalar_select %p29, %s30, %s31
      %p35 = pneg %p29
      %p36 = scmp.eq.s32.totalorder %s8, 1
      %p37 = por %p35, %p36
      %p38 = scmp.ne.s32.totalorder %s30, %s33
      %p39 = scmp.eq.s32.totalorder %s8, 0
      %p40 = por %p38, %p39
      %p41 = scmp.ne.s32.totalorder %s30, %s33
      %p42 = scmp.eq.s32.totalorder %s13, 1
      %p43 = por %p41, %p42
      %p44 = scmp.ne.s32.totalorder %s33, %s34
      %p45 = scmp.eq.s32.totalorder %s13, 0
      %p46 = por %p44, %p45
      %p47 = scmp.ne.s32.totalorder %s33, %s34
      %p48 = scmp.eq.s32.totalorder %s14, 1
      %p49 = por %p47, %p48
      %p51 = scmp.ne.s32.totalorder %s34, %s50
      %p52 = scmp.eq.s32.totalorder %s14, 0
      %p53 = por %p51, %p52
      %s54 = ssub.s32 %s15, %s27
      %p55 = scmp.eq.s32.totalorder %s54, 0
      %s57 = sadd.s32 %s56, 1
      %s58 = scalar_select %p55, %s56, %s57
      %p61 = pneg %p55
      %p62 = scmp.eq.s32.totalorder %s8, 1
      %p63 = por %p61, %p62
      %p64 = scmp.ne.s32.totalorder %s56, %s59
      %p65 = scmp.eq.s32.totalorder %s8, 0
      %p66 = por %p64, %p65
      %p67 = scmp.ne.s32.totalorder %s56, %s59
      %p68 = scmp.eq.s32.totalorder %s13, 1
      %p69 = por %p67, %p68
      %p70 = scmp.ne.s32.totalorder %s59, %s60
      %p71 = scmp.eq.s32.totalorder %s13, 0
      %p72 = por %p70, %p71
      %p73 = scmp.ne.s32.totalorder %s59, %s60
      %p74 = scmp.eq.s32.totalorder %s14, 1
      %p75 = por %p73, %p74
      %p77 = scmp.ne.s32.totalorder %s60, %s76
      %p78 = scmp.eq.s32.totalorder %s14, 0
      %p79 = por %p77, %p78
      %s80 = ssub.s32 %s15, %s27
      %s81 = ssub.s32 %s16, %s23
      %s82 = sor.u32 %s80, %s81
      %p83 = scmp.eq.s32.totalorder %s82, 0
      %s85 = sadd.s32 %s84, 1
      %s86 = scalar_select %p83, %s84, %s85
      %p89 = pneg %p83
      %p90 = scmp.eq.s32.totalorder %s8, 1
      %p91 = por %p89, %p90
      %p92 = scmp.ne.s32.totalorder %s84, %s87
      %p93 = scmp.eq.s32.totalorder %s8, 0
      %p94 = por %p92, %p93
      %p95 = scmp.ne.s32.totalorder %s84, %s87
      %p96 = scmp.eq.s32.totalorder %s13, 1
      %p97 = por %p95, %p96
      %p98 = scmp.ne.s32.totalorder %s87, %s88
      %p99 = scmp.eq.s32.totalorder %s13, 0
      %p100 = por %p98, %p99
      %p101 = scmp.ne.s32.totalorder %s87, %s88
      %p102 = scmp.eq.s32.totalorder %s14, 1
      %p103 = por %p101, %p102
      %p105 = scmp.ne.s32.totalorder %s88, %s104
      %p106 = scmp.eq.s32.totalorder %s14, 0
      %p107 = por %p105, %p106
      %p108 = scmp.le.s32.totalorder 1, %s8
      %p109 = scmp.lt.s32.totalorder %s8, 3
      %p110 = pnand %p108, %p109
      %p111 = pneg %p110
      // Predicated region
      $region9: #{tpu_custom_call.1} parent=5 // pred_check
        _
      $region10: #{tpu_custom_call.1} parent=5 // pred_check_branch
        %113 = sbr.rel (%p110) target = $region12
      $region11: #{tpu_custom_call.1} parent=5 // pred_region
        %s114 = ssub.s32 %s8, 1
        // Predicated region
        $region13: #{tpu_custom_call.1} parent=11 // pred_check
          %p115 = pneg %p46
        $region14: #{tpu_custom_call.1} parent=11 // pred_check_branch
          %117 = sbr.rel (%p115) target = $region16
        $region15: #{tpu_custom_call.1} parent=11 // pred_region
          %p118 = scmp.lt.s32.totalorder %s18, 0
          %s119 = scalar_select %p118, %s18, 0
          %s120 = scalar_lea.vmem %s0, %s119
        $region16: #{tpu_custom_call.1} parent=11 // pred_fallthru
          _
      $region12: #{tpu_custom_call.1} parent=5 // pred_fallthru
        _
      %p121 = scmp.lt.s32.totalorder %s8, 2
      // Predicated region
      $region17: #{tpu_custom_call.1} parent=5 // pred_check
        %p122 = pneg %p121
      $region18: #{tpu_custom_call.1} parent=5 // pred_check_branch
        %124 = sbr.rel (%p122) target = $region20
      $region19: #{tpu_custom_call.1} parent=5 // pred_region
        // Predicated region
        $region21: #{tpu_custom_call.1} parent=19 // pred_check
          %p125 = pneg %p66
        $region22: #{tpu_custom_call.1} parent=19 // pred_check_branch
          %127 = sbr.rel (%p125) target = $region24
        $region23: #{tpu_custom_call.1} parent=19 // pred_region
          %s128 = sand.u32 %s56, 1
          %s129 = sand.u32 %s56, 1
          %s130 = smul.addr %s129, 128
          %s131 = scalar_lea.vmem [#allocation2], %s130
          %s132 = smul.addr %s15, 8
          %s133 = scalar_lea.vmem %s1, %s132
          // Predicated region
          $region25: #{tpu_custom_call.1} parent=23 // pred_check
            _
          $region26: #{tpu_custom_call.1} parent=23 // pred_check_branch
            %135 = sbr.rel (0) target = $region28
          $region27: #{tpu_custom_call.1} parent=23 // pred_region
            // Predicated region
            $region29: #{tpu_custom_call.1} parent=27 // pred_check
              _
            $region30: #{tpu_custom_call.1} parent=27 // pred_check_branch
              %137 = sbr.rel (0) target = $region32
            $region31: #{tpu_custom_call.1} parent=27 // pred_region
              // Predicated region
              $region44: #{tpu_custom_call.1} parent=31 // pred_check
                _
              $region45: #{tpu_custom_call.1} parent=31 // pred_check_branch
                %182 = sbr.rel (0) target = $region47
              $region46: #{tpu_custom_call.1} parent=31 // pred_region
                loop: start=0, step=1, limit=1
                $region48: #{tpu_custom_call.1} parent=46 // loop_pre_header
                  _
                $region49: #{tpu_custom_call.1} parent=46 // loop_header
                  %s184 = sphi 0, %s188
                  %p185 = scmp.ge.s32.totalorder %s184, 1
                  %s189 = sphi %s133, %s133
                  %s190 = sphi %s131, %s131
                $region50: #{tpu_custom_call.1} parent=46 // loop_header_branch
                  %187 = sbr.rel (%p185) target = $region54
                $region51: #{tpu_custom_call.1} parent=46 // loop_body
                  %v191 = vld [vmem:[%s189] sm:$0xff]
                  %192 = vst [vmem:[%s190] sm:$0xff] %v191
                  %v193 = vld [vmem:[%s189 + $0x10] sm:$0xff]
                  %194 = vst [vmem:[%s190 + $0x8] sm:$0xff] %v193
                  %v195 = vld [vmem:[%s189 + $0x20] sm:$0xff]
                  %196 = vst [vmem:[%s190 + $0x10] sm:$0xff] %v195
                  %v197 = vld [vmem:[%s189 + $0x30] sm:$0xff]
                  %198 = vst [vmem:[%s190 + $0x18] sm:$0xff] %v197
                  %v199 = vld [vmem:[%s189 + $0x40] sm:$0xff]
                  %200 = vst [vmem:[%s190 + $0x20] sm:$0xff] %v199
                  %v201 = vld [vmem:[%s189 + $0x50] sm:$0xff]
                  %202 = vst [vmem:[%s190 + $0x28] sm:$0xff] %v201
                  %v203 = vld [vmem:[%s189 + $0x60] sm:$0xff]
                  %204 = vst [vmem:[%s190 + $0x30] sm:$0xff] %v203
                  %v205 = vld [vmem:[%s189 + $0x70] sm:$0xff]
                  %206 = vst [vmem:[%s190 + $0x38] sm:$0xff] %v205
                  %v207 = vld [vmem:[%s189 + $0x80] sm:$0xff]
                  %208 = vst [vmem:[%s190 + $0x40] sm:$0xff] %v207
                  %v209 = vld [vmem:[%s189 + $0x90] sm:$0xff]
                  %210 = vst [vmem:[%s190 + $0x48] sm:$0xff] %v209
                  %v211 = vld [vmem:[%s189 + $0xa0] sm:$0xff]
                  %212 = vst [vmem:[%s190 + $0x50] sm:$0xff] %v211
                  %v213 = vld [vmem:[%s189 + $0xb0] sm:$0xff]
                  %214 = vst [vmem:[%s190 + $0x58] sm:$0xff] %v213
                  %v215 = vld [vmem:[%s189 + $0xc0] sm:$0xff]
                  %216 = vst [vmem:[%s190 + $0x60] sm:$0xff] %v215
                  %v217 = vld [vmem:[%s189 + $0xd0] sm:$0xff]
                  %218 = vst [vmem:[%s190 + $0x68] sm:$0xff] %v217
                  %v219 = vld [vmem:[%s189 + $0xe0] sm:$0xff]
                  %220 = vst [vmem:[%s190 + $0x70] sm:$0xff] %v219
                  %v221 = vld [vmem:[%s189 + $0xf0] sm:$0xff]
                  %222 = vst [vmem:[%s190 + $0x78] sm:$0xff] %v221
                $region52: #{tpu_custom_call.1} parent=46 // loop_footer
                  %s188 = sadd.s32 1, %s184
                $region53: #{tpu_custom_call.1} parent=46 // loop_footer_branch
                  %183 = sbr.rel target = $region49
                $region54: #{tpu_custom_call.1} parent=46 // loop_exit
                  _
              $region47: #{tpu_custom_call.1} parent=31 // pred_fallthru
                _
              // Predicated region
              $region55: #{tpu_custom_call.1} parent=31 // pred_check
                _
              $region56: #{tpu_custom_call.1} parent=31 // pred_check_branch
                %224 = sbr.rel target = $region58
              $region57: #{tpu_custom_call.1} parent=31 // pred_region
                _
              $region58: #{tpu_custom_call.1} parent=31 // pred_fallthru
                _
            $region32: #{tpu_custom_call.1} parent=27 // pred_fallthru
              _
            // Predicated region
            $region33: #{tpu_custom_call.1} parent=27 // pred_check
              _
            $region34: #{tpu_custom_call.1} parent=27 // pred_check_branch
              %139 = sbr.rel target = $region36
            $region35: #{tpu_custom_call.1} parent=27 // pred_region
              loop: start=0, step=1, limit=1
              $region37: #{tpu_custom_call.1} parent=35 // loop_pre_header
                _
              $region38: #{tpu_custom_call.1} parent=35 // loop_header
                %s142 = sphi 0, %s146
                %p143 = scmp.ge.s32.totalorder %s142, 1
                %s147 = sphi %s133, %s133
                %s148 = sphi %s131, %s131
              $region39: #{tpu_custom_call.1} parent=35 // loop_header_branch
                %145 = sbr.rel (%p143) target = $region43
              $region40: #{tpu_custom_call.1} parent=35 // loop_body
                %v149 = vld [vmem:[%s147] sm:$0xff]
                %150 = vst [vmem:[%s148] sm:$0xff] %v149
                %v151 = vld [vmem:[%s147 + $0x10] sm:$0xff]
                %152 = vst [vmem:[%s148 + $0x8] sm:$0xff] %v151
                %v153 = vld [vmem:[%s147 + $0x20] sm:$0xff]
                %154 = vst [vmem:[%s148 + $0x10] sm:$0xff] %v153
                %v155 = vld [vmem:[%s147 + $0x30] sm:$0xff]
                %156 = vst [vmem:[%s148 + $0x18] sm:$0xff] %v155
                %v157 = vld [vmem:[%s147 + $0x40] sm:$0xff]
                %158 = vst [vmem:[%s148 + $0x20] sm:$0xff] %v157
                %v159 = vld [vmem:[%s147 + $0x50] sm:$0xff]
                %160 = vst [vmem:[%s148 + $0x28] sm:$0xff] %v159
                %v161 = vld [vmem:[%s147 + $0x60] sm:$0xff]
                %162 = vst [vmem:[%s148 + $0x30] sm:$0xff] %v161
                %v163 = vld [vmem:[%s147 + $0x70] sm:$0xff]
                %164 = vst [vmem:[%s148 + $0x38] sm:$0xff] %v163
                %v165 = vld [vmem:[%s147 + $0x80] sm:$0xff]
                %166 = vst [vmem:[%s148 + $0x40] sm:$0xff] %v165
                %v167 = vld [vmem:[%s147 + $0x90] sm:$0xff]
                %168 = vst [vmem:[%s148 + $0x48] sm:$0xff] %v167
                %v169 = vld [vmem:[%s147 + $0xa0] sm:$0xff]
                %170 = vst [vmem:[%s148 + $0x50] sm:$0xff] %v169
                %v171 = vld [vmem:[%s147 + $0xb0] sm:$0xff]
                %172 = vst [vmem:[%s148 + $0x58] sm:$0xff] %v171
                %v173 = vld [vmem:[%s147 + $0xc0] sm:$0xff]
                %174 = vst [vmem:[%s148 + $0x60] sm:$0xff] %v173
                %v175 = vld [vmem:[%s147 + $0xd0] sm:$0xff]
                %176 = vst [vmem:[%s148 + $0x68] sm:$0xff] %v175
                %v177 = vld [vmem:[%s147 + $0xe0] sm:$0xff]
                %178 = vst [vmem:[%s148 + $0x70] sm:$0xff] %v177
                %v179 = vld [vmem:[%s147 + $0xf0] sm:$0xff]
                %180 = vst [vmem:[%s148 + $0x78] sm:$0xff] %v179
              $region41: #{tpu_custom_call.1} parent=35 // loop_footer
                %s146 = sadd.s32 1, %s142
              $region42: #{tpu_custom_call.1} parent=35 // loop_footer_branch
                %141 = sbr.rel target = $region38
              $region43: #{tpu_custom_call.1} parent=35 // loop_exit
                _
            $region36: #{tpu_custom_call.1} parent=27 // pred_fallthru
              _
          $region28: #{tpu_custom_call.1} parent=23 // pred_fallthru
            _
          %225 = vnop
        $region24: #{tpu_custom_call.1} parent=19 // pred_fallthru
          _
      $region20: #{tpu_custom_call.1} parent=5 // pred_fallthru
        _
      %p226 = scmp.le.s32.totalorder 1, %s8
      %p227 = scmp.lt.s32.totalorder %s8, 3
      %p228 = pnand %p226, %p227
      %p229 = pneg %p228
      // Predicated region
      $region59: #{tpu_custom_call.1} parent=5 // pred_check
        _
      $region60: #{tpu_custom_call.1} parent=5 // pred_check_branch
        %231 = sbr.rel (%p228) target = $region62
      $region61: #{tpu_custom_call.1} parent=5 // pred_region
        %s232 = ssub.s32 %s8, 1
        %s233 = sand.u32 %s59, 1
        %s234 = sand.u32 %s59, 1
        %s235 = smul.addr %s234, 128
        %s236 = scalar_lea.vmem [#allocation2], %s235
        // Predicated region
        $region63: #{tpu_custom_call.1} parent=61 // pred_check
          %p237 = pneg %p72
        $region64: #{tpu_custom_call.1} parent=61 // pred_check_branch
          %239 = sbr.rel (%p237) target = $region66
        $region65: #{tpu_custom_call.1} parent=61 // pred_region
          _
        $region66: #{tpu_custom_call.1} parent=61 // pred_fallthru
          _
        %p240 = scmp.lt.s32.totalorder %s18, 0
        %s241 = scalar_select %p240, %s18, 0
        %s242 = scalar_lea.vmem %s0, %s241
        %p243 = pneg %p46
        %p244 = pneg %p43
        %s245 = sand.u32 %s59, 1
        %s246 = sand.u32 %s59, 1
        %s247 = smul.addr %s246, 128
        %s248 = scalar_lea.vmem [#allocation2], %s247
        %p249 = pneg %p72
        %p250 = pneg %p69
        %p251 = pneg %p100
        %p252 = pneg %p97
        %s253 = sand.u32 %s87, 1
        %s254 = sand.u32 %s87, 1
        %s255 = smul.addr %s254, 256
        %s256 = scalar_lea.vmem [#allocation3], %s255
        %p257 = scmp.lt.s32.totalorder %s18, 0
        %s258 = scalar_select %p257, %s18, 0
        %s259 = scalar_lea.vmem %s0, %s258
        %v260 = vld [vmem:[%s259] sm:$0x1]
        %v261 = vld [vmem:[%s259 + $0x1] sm:$0x1]
        %v262 = vld [vmem:[%s259 + $0x2] sm:$0x1]
        %v263 = vld [vmem:[%s259 + $0x3] sm:$0x1]
        %v264 = vld [vmem:[%s259 + $0x4] sm:$0x1]
        %v265 = vld [vmem:[%s259 + $0x5] sm:$0x1]
        %v266 = vld [vmem:[%s259 + $0x6] sm:$0x1]
        %v267 = vld [vmem:[%s259 + $0x7] sm:$0x1]
        %v268 = vld [vmem:[%s259 + $0x8] sm:$0x1]
        %v269 = vld [vmem:[%s259 + $0x9] sm:$0x1]
        %v270 = vld [vmem:[%s259 + $0xa] sm:$0x1]
        %v271 = vld [vmem:[%s259 + $0xb] sm:$0x1]
        %v272 = vld [vmem:[%s259 + $0xc] sm:$0x1]
        %v273 = vld [vmem:[%s259 + $0xd] sm:$0x1]
        %v274 = vld [vmem:[%s259 + $0xe] sm:$0x1]
        %v275 = vld [vmem:[%s259 + $0xf] sm:$0x1]
        %v292 = vlaneseq
        %v293 = vshrl.u32 %v292, 7
        %v294 = vsub.s32 0, %v293
        %v295 = vrot.slane %v260, %v294
        %v296 = vlaneseq
        %v297 = vshrl.u32 %v296, 7
        %v298 = vsub.s32 0, %v297
        %v299 = vrot.slane %v261, %v298
        %v300 = vlaneseq
        %v301 = vshrl.u32 %v300, 7
        %v302 = vsub.s32 0, %v301
        %v303 = vrot.slane %v262, %v302
        %v304 = vlaneseq
        %v305 = vshrl.u32 %v304, 7
        %v306 = vsub.s32 0, %v305
        %v307 = vrot.slane %v263, %v306
        %v308 = vlaneseq
        %v309 = vshrl.u32 %v308, 7
        %v310 = vsub.s32 0, %v309
        %v311 = vrot.slane %v264, %v310
        %v312 = vlaneseq
        %v313 = vshrl.u32 %v312, 7
        %v314 = vsub.s32 0, %v313
        %v315 = vrot.slane %v265, %v314
        %v316 = vlaneseq
        %v317 = vshrl.u32 %v316, 7
        %v318 = vsub.s32 0, %v317
        %v319 = vrot.slane %v266, %v318
        %v320 = vlaneseq
        %v321 = vshrl.u32 %v320, 7
        %v322 = vsub.s32 0, %v321
        %v323 = vrot.slane %v267, %v322
        %v324 = vlaneseq
        %v325 = vshrl.u32 %v324, 7
        %v326 = vsub.s32 0, %v325
        %v327 = vrot.slane %v268, %v326
        %v328 = vlaneseq
        %v329 = vshrl.u32 %v328, 7
        %v330 = vsub.s32 0, %v329
        %v331 = vrot.slane %v269, %v330
        %v332 = vlaneseq
        %v333 = vshrl.u32 %v332, 7
        %v334 = vsub.s32 0, %v333
        %v335 = vrot.slane %v270, %v334
        %v336 = vlaneseq
        %v337 = vshrl.u32 %v336, 7
        %v338 = vsub.s32 0, %v337
        %v339 = vrot.slane %v271, %v338
        %v340 = vlaneseq
        %v341 = vshrl.u32 %v340, 7
        %v342 = vsub.s32 0, %v341
        %v343 = vrot.slane %v272, %v342
        %v344 = vlaneseq
        %v345 = vshrl.u32 %v344, 7
        %v346 = vsub.s32 0, %v345
        %v347 = vrot.slane %v273, %v346
        %v348 = vlaneseq
        %v349 = vshrl.u32 %v348, 7
        %v350 = vsub.s32 0, %v349
        %v351 = vrot.slane %v274, %v350
        %v352 = vlaneseq
        %v353 = vshrl.u32 %v352, 7
        %v354 = vsub.s32 0, %v353
        %v355 = vrot.slane %v275, %v354
        %vm372 = vcmask 130048
        %373 = vst.msk [vmem:[%s256] sm:$0xff] %vm372, %v295
        %374 = vst.msk [vmem:[%s256 + $0x8] sm:$0xff] %vm372, %v299
        %375 = vst.msk [vmem:[%s256 + $0x10] sm:$0xff] %vm372, %v303
        %376 = vst.msk [vmem:[%s256 + $0x18] sm:$0xff] %vm372, %v307
        %377 = vst.msk [vmem:[%s256 + $0x20] sm:$0xff] %vm372, %v311
        %378 = vst.msk [vmem:[%s256 + $0x28] sm:$0xff] %vm372, %v315
        %379 = vst.msk [vmem:[%s256 + $0x30] sm:$0xff] %vm372, %v319
        %380 = vst.msk [vmem:[%s256 + $0x38] sm:$0xff] %vm372, %v323
        %381 = vst.msk [vmem:[%s256 + $0x40] sm:$0xff] %vm372, %v327
        %382 = vst.msk [vmem:[%s256 + $0x48] sm:$0xff] %vm372, %v331
        %383 = vst.msk [vmem:[%s256 + $0x50] sm:$0xff] %vm372, %v335
        %384 = vst.msk [vmem:[%s256 + $0x58] sm:$0xff] %vm372, %v339
        %385 = vst.msk [vmem:[%s256 + $0x60] sm:$0xff] %vm372, %v343
        %386 = vst.msk [vmem:[%s256 + $0x68] sm:$0xff] %vm372, %v347
        %387 = vst.msk [vmem:[%s256 + $0x70] sm:$0xff] %vm372, %v351
        %388 = vst.msk [vmem:[%s256 + $0x78] sm:$0xff] %vm372, %v355
        %v389 = vld [vmem:[%s236] sm:$0xff]
        %v390 = vld [vmem:[%s236 + $0x8] sm:$0xff]
        %v391 = vld [vmem:[%s236 + $0x10] sm:$0xff]
        %v392 = vld [vmem:[%s236 + $0x18] sm:$0xff]
        %v393 = vld [vmem:[%s236 + $0x20] sm:$0xff]
        %v394 = vld [vmem:[%s236 + $0x28] sm:$0xff]
        %v395 = vld [vmem:[%s236 + $0x30] sm:$0xff]
        %v396 = vld [vmem:[%s236 + $0x38] sm:$0xff]
        %v397 = vld [vmem:[%s236 + $0x40] sm:$0xff]
        %v398 = vld [vmem:[%s236 + $0x48] sm:$0xff]
        %v399 = vld [vmem:[%s236 + $0x50] sm:$0xff]
        %v400 = vld [vmem:[%s236 + $0x58] sm:$0xff]
        %v401 = vld [vmem:[%s236 + $0x60] sm:$0xff]
        %v402 = vld [vmem:[%s236 + $0x68] sm:$0xff]
        %v403 = vld [vmem:[%s236 + $0x70] sm:$0xff]
        %v404 = vld [vmem:[%s236 + $0x78] sm:$0xff]
        %406 = vset.pattern.permute.xlu0 0
        %407 = vperm.xlu0 %406, %v389
        %v408 = vpop.permute.xlu0 %407
        %411 = vset.pattern.permute.xlu0 0
        %412 = vperm.xlu0 %411, %v390
        %v413 = vpop.permute.xlu0 %412
        %416 = vset.pattern.permute.xlu0 0
        %417 = vperm.xlu0 %416, %v391
        %v418 = vpop.permute.xlu0 %417
        %421 = vset.pattern.permute.xlu0 0
        %422 = vperm.xlu0 %421, %v392
        %v423 = vpop.permute.xlu0 %422
        %426 = vset.pattern.permute.xlu0 0
        %427 = vperm.xlu0 %426, %v393
        %v428 = vpop.permute.xlu0 %427
        %431 = vset.pattern.permute.xlu0 0
        %432 = vperm.xlu0 %431, %v394
        %v433 = vpop.permute.xlu0 %432
        %436 = vset.pattern.permute.xlu0 0
        %437 = vperm.xlu0 %436, %v395
        %v438 = vpop.permute.xlu0 %437
        %441 = vset.pattern.permute.xlu0 0
        %442 = vperm.xlu0 %441, %v396
        %v443 = vpop.permute.xlu0 %442
        %446 = vset.pattern.permute.xlu0 0
        %447 = vperm.xlu0 %446, %v397
        %v448 = vpop.permute.xlu0 %447
        %451 = vset.pattern.permute.xlu0 0
        %452 = vperm.xlu0 %451, %v398
        %v453 = vpop.permute.xlu0 %452
        %456 = vset.pattern.permute.xlu0 0
        %457 = vperm.xlu0 %456, %v399
        %v458 = vpop.permute.xlu0 %457
        %461 = vset.pattern.permute.xlu0 0
        %462 = vperm.xlu0 %461, %v400
        %v463 = vpop.permute.xlu0 %462
        %466 = vset.pattern.permute.xlu0 0
        %467 = vperm.xlu0 %466, %v401
        %v468 = vpop.permute.xlu0 %467
        %471 = vset.pattern.permute.xlu0 0
        %472 = vperm.xlu0 %471, %v402
        %v473 = vpop.permute.xlu0 %472
        %476 = vset.pattern.permute.xlu0 0
        %477 = vperm.xlu0 %476, %v403
        %v478 = vpop.permute.xlu0 %477
        %481 = vset.pattern.permute.xlu0 0
        %482 = vperm.xlu0 %481, %v404
        %v483 = vpop.permute.xlu0 %482
        %s485 = scalar_lea.vmem %s256, 128 [#allocation3]
        %486 = vst.msk [vmem:[%s485] sm:$0xff] %vm372, %v408
        %487 = vst.msk [vmem:[%s485 + $0x8] sm:$0xff] %vm372, %v413
        %488 = vst.msk [vmem:[%s485 + $0x10] sm:$0xff] %vm372, %v418
        %489 = vst.msk [vmem:[%s485 + $0x18] sm:$0xff] %vm372, %v423
        %490 = vst.msk [vmem:[%s485 + $0x20] sm:$0xff] %vm372, %v428
        %491 = vst.msk [vmem:[%s485 + $0x28] sm:$0xff] %vm372, %v433
        %492 = vst.msk [vmem:[%s485 + $0x30] sm:$0xff] %vm372, %v438
        %493 = vst.msk [vmem:[%s485 + $0x38] sm:$0xff] %vm372, %v443
        %494 = vst.msk [vmem:[%s485 + $0x40] sm:$0xff] %vm372, %v448
        %495 = vst.msk [vmem:[%s485 + $0x48] sm:$0xff] %vm372, %v453
        %496 = vst.msk [vmem:[%s485 + $0x50] sm:$0xff] %vm372, %v458
        %497 = vst.msk [vmem:[%s485 + $0x58] sm:$0xff] %vm372, %v463
        %498 = vst.msk [vmem:[%s485 + $0x60] sm:$0xff] %vm372, %v468
        %499 = vst.msk [vmem:[%s485 + $0x68] sm:$0xff] %vm372, %v473
        %500 = vst.msk [vmem:[%s485 + $0x70] sm:$0xff] %vm372, %v478
        %501 = vst.msk [vmem:[%s485 + $0x78] sm:$0xff] %vm372, %v483
        %s502 = sand.u32 %s87, 1
        %s503 = sand.u32 %s87, 1
        %s504 = smul.addr %s503, 256
        %s505 = scalar_lea.vmem [#allocation3], %s504
        // Predicated region
        $region67: #{tpu_custom_call.1} parent=61 // pred_check
          %p506 = pneg %p97
        $region68: #{tpu_custom_call.1} parent=61 // pred_check_branch
          %508 = sbr.rel (%p506) target = $region70
        $region69: #{tpu_custom_call.1} parent=61 // pred_region
          %s509 = sadd.s32 %s18, %s17
          %s510 = smul.addr %s509, 8
          %s511 = scalar_lea.vmem %s2, %s510
          // Predicated region
          $region71: #{tpu_custom_call.1} parent=69 // pred_check
            _
          $region72: #{tpu_custom_call.1} parent=69 // pred_check_branch
            %513 = sbr.rel (0) target = $region74
          $region73: #{tpu_custom_call.1} parent=69 // pred_region
            // Predicated region
            $region75: #{tpu_custom_call.1} parent=73 // pred_check
              _
            $region76: #{tpu_custom_call.1} parent=73 // pred_check_branch
              %515 = sbr.rel (0) target = $region78
            $region77: #{tpu_custom_call.1} parent=73 // pred_region
              // Predicated region
              $region90: #{tpu_custom_call.1} parent=77 // pred_check
                _
              $region91: #{tpu_custom_call.1} parent=77 // pred_check_branch
                %592 = sbr.rel (0) target = $region93
              $region92: #{tpu_custom_call.1} parent=77 // pred_region
                loop: start=0, step=1, limit=1
                $region94: #{tpu_custom_call.1} parent=92 // loop_pre_header
                  _
                $region95: #{tpu_custom_call.1} parent=92 // loop_header
                  %s594 = sphi 0, %s598
                  %p595 = scmp.ge.s32.totalorder %s594, 1
                  %s599 = sphi %s505, %s505
                  %s600 = sphi %s511, %s511
                $region96: #{tpu_custom_call.1} parent=92 // loop_header_branch
                  %597 = sbr.rel (%p595) target = $region100
                $region97: #{tpu_custom_call.1} parent=92 // loop_body
                  %v601 = vld [vmem:[%s599] sm:$0xff]
                  %602 = vst [vmem:[%s600] sm:$0xff] %v601
                  %v603 = vld [vmem:[%s599 + $0x8] sm:$0xff]
                  %604 = vst [vmem:[%s600 + $0x10] sm:$0xff] %v603
                  %v605 = vld [vmem:[%s599 + $0x10] sm:$0xff]
                  %606 = vst [vmem:[%s600 + $0x20] sm:$0xff] %v605
                  %v607 = vld [vmem:[%s599 + $0x18] sm:$0xff]
                  %608 = vst [vmem:[%s600 + $0x30] sm:$0xff] %v607
                  %v609 = vld [vmem:[%s599 + $0x20] sm:$0xff]
                  %610 = vst [vmem:[%s600 + $0x40] sm:$0xff] %v609
                  %v611 = vld [vmem:[%s599 + $0x28] sm:$0xff]
                  %612 = vst [vmem:[%s600 + $0x50] sm:$0xff] %v611
                  %v613 = vld [vmem:[%s599 + $0x30] sm:$0xff]
                  %614 = vst [vmem:[%s600 + $0x60] sm:$0xff] %v613
                  %v615 = vld [vmem:[%s599 + $0x38] sm:$0xff]
                  %616 = vst [vmem:[%s600 + $0x70] sm:$0xff] %v615
                  %v617 = vld [vmem:[%s599 + $0x40] sm:$0xff]
                  %618 = vst [vmem:[%s600 + $0x80] sm:$0xff] %v617
                  %v619 = vld [vmem:[%s599 + $0x48] sm:$0xff]
                  %620 = vst [vmem:[%s600 + $0x90] sm:$0xff] %v619
                  %v621 = vld [vmem:[%s599 + $0x50] sm:$0xff]
                  %622 = vst [vmem:[%s600 + $0xa0] sm:$0xff] %v621
                  %v623 = vld [vmem:[%s599 + $0x58] sm:$0xff]
                  %624 = vst [vmem:[%s600 + $0xb0] sm:$0xff] %v623
                  %v625 = vld [vmem:[%s599 + $0x60] sm:$0xff]
                  %626 = vst [vmem:[%s600 + $0xc0] sm:$0xff] %v625
                  %v627 = vld [vmem:[%s599 + $0x68] sm:$0xff]
                  %628 = vst [vmem:[%s600 + $0xd0] sm:$0xff] %v627
                  %v629 = vld [vmem:[%s599 + $0x70] sm:$0xff]
                  %630 = vst [vmem:[%s600 + $0xe0] sm:$0xff] %v629
                  %v631 = vld [vmem:[%s599 + $0x78] sm:$0xff]
                  %632 = vst [vmem:[%s600 + $0xf0] sm:$0xff] %v631
                  %v633 = vld [vmem:[%s599 + $0x80] sm:$0xff]
                  %634 = vst [vmem:[%s600 + $0x100] sm:$0xff] %v633
                  %v635 = vld [vmem:[%s599 + $0x88] sm:$0xff]
                  %636 = vst [vmem:[%s600 + $0x110] sm:$0xff] %v635
                  %v637 = vld [vmem:[%s599 + $0x90] sm:$0xff]
                  %638 = vst [vmem:[%s600 + $0x120] sm:$0xff] %v637
                  %v639 = vld [vmem:[%s599 + $0x98] sm:$0xff]
                  %640 = vst [vmem:[%s600 + $0x130] sm:$0xff] %v639
                  %v641 = vld [vmem:[%s599 + $0xa0] sm:$0xff]
                  %642 = vst [vmem:[%s600 + $0x140] sm:$0xff] %v641
                  %v643 = vld [vmem:[%s599 + $0xa8] sm:$0xff]
                  %644 = vst [vmem:[%s600 + $0x150] sm:$0xff] %v643
                  %v645 = vld [vmem:[%s599 + $0xb0] sm:$0xff]
                  %646 = vst [vmem:[%s600 + $0x160] sm:$0xff] %v645
                  %v647 = vld [vmem:[%s599 + $0xb8] sm:$0xff]
                  %648 = vst [vmem:[%s600 + $0x170] sm:$0xff] %v647
                  %v649 = vld [vmem:[%s599 + $0xc0] sm:$0xff]
                  %650 = vst [vmem:[%s600 + $0x180] sm:$0xff] %v649
                  %v651 = vld [vmem:[%s599 + $0xc8] sm:$0xff]
                  %652 = vst [vmem:[%s600 + $0x190] sm:$0xff] %v651
                  %v653 = vld [vmem:[%s599 + $0xd0] sm:$0xff]
                  %654 = vst [vmem:[%s600 + $0x1a0] sm:$0xff] %v653
                  %v655 = vld [vmem:[%s599 + $0xd8] sm:$0xff]
                  %656 = vst [vmem:[%s600 + $0x1b0] sm:$0xff] %v655
                  %v657 = vld [vmem:[%s599 + $0xe0] sm:$0xff]
                  %658 = vst [vmem:[%s600 + $0x1c0] sm:$0xff] %v657
                  %v659 = vld [vmem:[%s599 + $0xe8] sm:$0xff]
                  %660 = vst [vmem:[%s600 + $0x1d0] sm:$0xff] %v659
                  %v661 = vld [vmem:[%s599 + $0xf0] sm:$0xff]
                  %662 = vst [vmem:[%s600 + $0x1e0] sm:$0xff] %v661
                  %v663 = vld [vmem:[%s599 + $0xf8] sm:$0xff]
                  %664 = vst [vmem:[%s600 + $0x1f0] sm:$0xff] %v663
                $region98: #{tpu_custom_call.1} parent=92 // loop_footer
                  %s598 = sadd.s32 1, %s594
                $region99: #{tpu_custom_call.1} parent=92 // loop_footer_branch
                  %593 = sbr.rel target = $region95
                $region100: #{tpu_custom_call.1} parent=92 // loop_exit
                  _
              $region93: #{tpu_custom_call.1} parent=77 // pred_fallthru
                _
              // Predicated region
              $region101: #{tpu_custom_call.1} parent=77 // pred_check
                _
              $region102: #{tpu_custom_call.1} parent=77 // pred_check_branch
                %666 = sbr.rel target = $region104
              $region103: #{tpu_custom_call.1} parent=77 // pred_region
                _
              $region104: #{tpu_custom_call.1} parent=77 // pred_fallthru
                _
            $region78: #{tpu_custom_call.1} parent=73 // pred_fallthru
              _
            // Predicated region
            $region79: #{tpu_custom_call.1} parent=73 // pred_check
              _
            $region80: #{tpu_custom_call.1} parent=73 // pred_check_branch
              %517 = sbr.rel target = $region82
            $region81: #{tpu_custom_call.1} parent=73 // pred_region
              loop: start=0, step=1, limit=1
              $region83: #{tpu_custom_call.1} parent=81 // loop_pre_header
                _
              $region84: #{tpu_custom_call.1} parent=81 // loop_header
                %s520 = sphi 0, %s524
                %p521 = scmp.ge.s32.totalorder %s520, 1
                %s525 = sphi %s505, %s505
                %s526 = sphi %s511, %s511
              $region85: #{tpu_custom_call.1} parent=81 // loop_header_branch
                %523 = sbr.rel (%p521) target = $region89
              $region86: #{tpu_custom_call.1} parent=81 // loop_body
                %v527 = vld [vmem:[%s525] sm:$0xff]
                %528 = vst [vmem:[%s526] sm:$0xff] %v527
                %v529 = vld [vmem:[%s525 + $0x8] sm:$0xff]
                %530 = vst [vmem:[%s526 + $0x10] sm:$0xff] %v529
                %v531 = vld [vmem:[%s525 + $0x10] sm:$0xff]
                %532 = vst [vmem:[%s526 + $0x20] sm:$0xff] %v531
                %v533 = vld [vmem:[%s525 + $0x18] sm:$0xff]
                %534 = vst [vmem:[%s526 + $0x30] sm:$0xff] %v533
                %v535 = vld [vmem:[%s525 + $0x20] sm:$0xff]
                %536 = vst [vmem:[%s526 + $0x40] sm:$0xff] %v535
                %v537 = vld [vmem:[%s525 + $0x28] sm:$0xff]
                %538 = vst [vmem:[%s526 + $0x50] sm:$0xff] %v537
                %v539 = vld [vmem:[%s525 + $0x30] sm:$0xff]
                %540 = vst [vmem:[%s526 + $0x60] sm:$0xff] %v539
                %v541 = vld [vmem:[%s525 + $0x38] sm:$0xff]
                %542 = vst [vmem:[%s526 + $0x70] sm:$0xff] %v541
                %v543 = vld [vmem:[%s525 + $0x40] sm:$0xff]
                %544 = vst [vmem:[%s526 + $0x80] sm:$0xff] %v543
                %v545 = vld [vmem:[%s525 + $0x48] sm:$0xff]
                %546 = vst [vmem:[%s526 + $0x90] sm:$0xff] %v545
                %v547 = vld [vmem:[%s525 + $0x50] sm:$0xff]
                %548 = vst [vmem:[%s526 + $0xa0] sm:$0xff] %v547
                %v549 = vld [vmem:[%s525 + $0x58] sm:$0xff]
                %550 = vst [vmem:[%s526 + $0xb0] sm:$0xff] %v549
                %v551 = vld [vmem:[%s525 + $0x60] sm:$0xff]
                %552 = vst [vmem:[%s526 + $0xc0] sm:$0xff] %v551
                %v553 = vld [vmem:[%s525 + $0x68] sm:$0xff]
                %554 = vst [vmem:[%s526 + $0xd0] sm:$0xff] %v553
                %v555 = vld [vmem:[%s525 + $0x70] sm:$0xff]
                %556 = vst [vmem:[%s526 + $0xe0] sm:$0xff] %v555
                %v557 = vld [vmem:[%s525 + $0x78] sm:$0xff]
                %558 = vst [vmem:[%s526 + $0xf0] sm:$0xff] %v557
                %v559 = vld [vmem:[%s525 + $0x80] sm:$0xff]
                %560 = vst [vmem:[%s526 + $0x100] sm:$0xff] %v559
                %v561 = vld [vmem:[%s525 + $0x88] sm:$0xff]
                %562 = vst [vmem:[%s526 + $0x110] sm:$0xff] %v561
                %v563 = vld [vmem:[%s525 + $0x90] sm:$0xff]
                %564 = vst [vmem:[%s526 + $0x120] sm:$0xff] %v563
                %v565 = vld [vmem:[%s525 + $0x98] sm:$0xff]
                %566 = vst [vmem:[%s526 + $0x130] sm:$0xff] %v565
                %v567 = vld [vmem:[%s525 + $0xa0] sm:$0xff]
                %568 = vst [vmem:[%s526 + $0x140] sm:$0xff] %v567
                %v569 = vld [vmem:[%s525 + $0xa8] sm:$0xff]
                %570 = vst [vmem:[%s526 + $0x150] sm:$0xff] %v569
                %v571 = vld [vmem:[%s525 + $0xb0] sm:$0xff]
                %572 = vst [vmem:[%s526 + $0x160] sm:$0xff] %v571
                %v573 = vld [vmem:[%s525 + $0xb8] sm:$0xff]
                %574 = vst [vmem:[%s526 + $0x170] sm:$0xff] %v573
                %v575 = vld [vmem:[%s525 + $0xc0] sm:$0xff]
                %576 = vst [vmem:[%s526 + $0x180] sm:$0xff] %v575
                %v577 = vld [vmem:[%s525 + $0xc8] sm:$0xff]
                %578 = vst [vmem:[%s526 + $0x190] sm:$0xff] %v577
                %v579 = vld [vmem:[%s525 + $0xd0] sm:$0xff]
                %580 = vst [vmem:[%s526 + $0x1a0] sm:$0xff] %v579
                %v581 = vld [vmem:[%s525 + $0xd8] sm:$0xff]
                %582 = vst [vmem:[%s526 + $0x1b0] sm:$0xff] %v581
                %v583 = vld [vmem:[%s525 + $0xe0] sm:$0xff]
                %584 = vst [vmem:[%s526 + $0x1c0] sm:$0xff] %v583
                %v585 = vld [vmem:[%s525 + $0xe8] sm:$0xff]
                %586 = vst [vmem:[%s526 + $0x1d0] sm:$0xff] %v585
                %v587 = vld [vmem:[%s525 + $0xf0] sm:$0xff]
                %588 = vst [vmem:[%s526 + $0x1e0] sm:$0xff] %v587
                %v589 = vld [vmem:[%s525 + $0xf8] sm:$0xff]
                %590 = vst [vmem:[%s526 + $0x1f0] sm:$0xff] %v589
              $region87: #{tpu_custom_call.1} parent=81 // loop_footer
                %s524 = sadd.s32 1, %s520
              $region88: #{tpu_custom_call.1} parent=81 // loop_footer_branch
                %519 = sbr.rel target = $region84
              $region89: #{tpu_custom_call.1} parent=81 // loop_exit
                _
            $region82: #{tpu_custom_call.1} parent=73 // pred_fallthru
              _
          $region74: #{tpu_custom_call.1} parent=69 // pred_fallthru
            _
          %667 = vnop
        $region70: #{tpu_custom_call.1} parent=61 // pred_fallthru
          _
      $region62: #{tpu_custom_call.1} parent=5 // pred_fallthru
        _
      %p668 = scmp.le.s32.totalorder 2, %s8
      // Predicated region
      $region105: #{tpu_custom_call.1} parent=5 // pred_check
        %p669 = pneg %p668
      $region106: #{tpu_custom_call.1} parent=5 // pred_check_branch
        %671 = sbr.rel (%p669) target = $region108
      $region107: #{tpu_custom_call.1} parent=5 // pred_region
        %s672 = ssub.s32 %s8, 2
        // Predicated region
        $region109: #{tpu_custom_call.1} parent=107 // pred_check
          %p673 = pneg %p103
        $region110: #{tpu_custom_call.1} parent=107 // pred_check_branch
          %675 = sbr.rel (%p673) target = $region112
        $region111: #{tpu_custom_call.1} parent=107 // pred_region
          %s676 = sand.u32 %s88, 1
          %s677 = sand.u32 %s88, 1
          %s678 = smul.addr %s677, 256
          %s679 = scalar_lea.vmem [#allocation3], %s678
        $region112: #{tpu_custom_call.1} parent=107 // pred_fallthru
          _
      $region108: #{tpu_custom_call.1} parent=5 // pred_fallthru
        _
    $region6: #{tpu_custom_call.1} parent=1 // loop_footer
      %s12 = sadd.s32 1, %s8
    $region7: #{tpu_custom_call.1} parent=1 // loop_footer_branch
      %7 = sbr.rel target = $region3
    $region8: #{tpu_custom_call.1} parent=1 // loop_exit
      _

</llo_original>
